<compile_context>
chip_gen: v6e
topology: v6e:2x2x1
jax: 0.10.0
libtpu: 0.0.40
codegen_flags: <defaults>
</compile_context>

<pallas_src>
import functools

import jax
import jax.numpy as jnp
from jax import lax
from jax.experimental import pallas as pl
from jax.experimental.pallas import tpu as pltpu


# sigmoid(-1e30 + anything reasonable) underflows to exactly 0.0 in f32/bf16,
# so a padded timestep is an exact identity update (h_next = h + 0*(...) = h).
_NEG_BIG = -1.0e30


def _round_up(n, m):
    return ((n + m - 1) // m) * m


def _ligru_recurrence_kernel(xp_ref, wh_ref, h_out_ref, *, hidden_p, t_chunk, unroll):
    """Runs `t_chunk` timesteps of the LiGRU recurrence for one batch tile.

    xp_ref:    (t_chunk, Bt, 2*Hp) time-major input projections (biases folded
                                   in), stream dtype (bf16 or f32).
    wh_ref:    (Hp, 2*Hp)          fused recurrent weights [w_h2z | w_h2h].
    h_out_ref: (Bt, Hp) f32        hidden state; resident across time chunks
                                   (constant index_map along the time axis).
    """
    c = pl.program_id(1)  # time-chunk axis (innermost, "arbitrary")

    @pl.when(c == 0)
    def _():
        h_out_ref[...] = jnp.zeros_like(h_out_ref)

    w_h = wh_ref[...]     # (Hp, 2Hp) — hoisted out of the loop
    h0 = h_out_ref[...]   # (Bt, Hp) f32 carry

    def body(s, h):
        # x_t @ [w_x2z | w_x2h] + [b_x2z | b_x2h]; cast up once, gate math in f32.
        gates_x = xp_ref[s].astype(jnp.float32)                       # (Bt, 2Hp)
        pre = gates_x + jnp.dot(
            h.astype(w_h.dtype), w_h, preferred_element_type=jnp.float32
        )
        z = jax.nn.sigmoid(pre[:, :hidden_p])
        h_cand = jnp.maximum(pre[:, hidden_p:], 0.0)
        # == (1 - z) * h + z * h_cand, one fewer VPU op on the serial chain.
        return h + z * (h_cand - h)

    # Static trip count (T was padded in the wrapper) + unroll so the LLO
    # scheduler can overlap the next step's loads with this step's EUP/VPU tail.
    h_out_ref[...] = lax.fori_loop(0, t_chunk, body, h0, unroll=unroll)


def ligru_decoder_forward(
    x,
    params,
    *,
    stream_dtype=jnp.bfloat16,
    vmem_stream_budget_bytes=24 << 20,
):
    """x: (B, T, I) float32.  Returns (B, 1) float32."""
    B, T, I = x.shape
    H = params["w_h2z"].shape[0]
    f32 = jnp.float32

    # --- Lane-align the hidden size (gate slices / output stores / MXU N). ---
    Hp = _round_up(H, 128)
    two_hp = 2 * Hp
    pad_h = Hp - H
    stream_itemsize = jnp.dtype(stream_dtype).itemsize

    # --- Megacore batch split (v7x): only when both halves stay sublane-aligned.
    num_b_tiles = 2 if (B % 2 == 0 and (B // 2) % 8 == 0) else 1
    b_tile = B // num_b_tiles

    # --- VMEM-budgeted time chunk (double-buffered x_proj stream dominates). ---
    per_step_bytes = b_tile * two_hp * stream_itemsize
    t_chunk = vmem_stream_budget_bytes // (2 * per_step_bytes)
    t_chunk = max(8, (t_chunk // 8) * 8)          # multiple of 8 (clean unroll)
    t_chunk = min(t_chunk, _round_up(T, 8))       # never bigger than padded T
    T_pad = _round_up(T, t_chunk)
    num_chunks = T_pad // t_chunk
    unroll = t_chunk if t_chunk <= 32 else 8      # divides t_chunk by construction

    # --- Fuse + zero-pad gate weights: [z-block | h-block], each Hp wide. ---
    def pad_cols(w):  # (..., H) -> (..., Hp)
        return jnp.pad(w, [(0, 0)] * (w.ndim - 1) + [(0, pad_h)])

    w_x = jnp.concatenate(
        [pad_cols(params["w_x2z"]), pad_cols(params["w_x2h"])], axis=1
    )  # (I, 2Hp)
    b_x = jnp.concatenate(
        [pad_cols(params["b_x2z"]), pad_cols(params["b_x2h"])], axis=1
    )  # (1, 2Hp)
    w_h = jnp.concatenate(
        [
            jnp.pad(params["w_h2z"], ((0, pad_h), (0, pad_h))),
            jnp.pad(params["w_h2h"], ((0, pad_h), (0, pad_h))),
        ],
        axis=1,
    )  # (Hp, 2Hp); padded rows/cols are zero so padded h lanes stay zero.

    # --- Hoisted input projection: transpose x once (cheap: I << 2Hp), then a
    # plain (T*B, I) @ (I, 2Hp) GEMM producing the time-major result directly.
    x_tm = jnp.transpose(x, (1, 0, 2)).astype(f32)                    # (T, B, I)
    x_proj = (x_tm.reshape(T * B, I) @ w_x).reshape(T, B, two_hp) + b_x

    # --- Pad T so every chunk is full (static trip count, no OOB tail blocks).
    # Padded steps: z pre-activation = -1e30 -> sigmoid == 0 -> exact identity.
    if T_pad > T:
        pad_z = jnp.full((T_pad - T, B, Hp), _NEG_BIG, f32)
        pad_c = jnp.zeros((T_pad - T, B, Hp), f32)
        x_proj = jnp.concatenate(
            [x_proj, jnp.concatenate([pad_z, pad_c], axis=-1)], axis=0
        )

    # Stream the dominant HBM traffic (and the recurrent weights) narrow;
    # all accumulation / gate math stays f32 inside the kernel.
    x_proj = x_proj.astype(stream_dtype)
    w_h = w_h.astype(stream_dtype)

    # --- VMEM footprint -> vmem_limit_bytes (kept well under v7x's 64 MiB). ---
    footprint = (
        2 * t_chunk * b_tile * two_hp * stream_itemsize   # double-buffered x_proj
        + 2 * Hp * two_hp * stream_itemsize               # W_h buffers
        + 2 * b_tile * Hp * 4                             # resident f32 carry
    )
    vmem_limit = int(min(max(footprint * 3 // 2 + (2 << 20), 8 << 20), 64 << 20))

    grid_spec = pltpu.PrefetchScalarGridSpec(
        num_scalar_prefetch=0,
        grid=(num_b_tiles, num_chunks),
        in_specs=[
            pl.BlockSpec((t_chunk, b_tile, two_hp), lambda b, c: (c, b, 0)),
            pl.BlockSpec((Hp, two_hp), lambda b, c: (0, 0)),
        ],
        out_specs=pl.BlockSpec((b_tile, Hp), lambda b, c: (b, 0)),
    )

    kernel = functools.partial(
        _ligru_recurrence_kernel, hidden_p=Hp, t_chunk=t_chunk, unroll=unroll
    )

    h_final = pl.pallas_call(
        kernel,
        out_shape=jax.ShapeDtypeStruct((B, Hp), jnp.float32),
        grid_spec=grid_spec,
        compiler_params=pltpu.CompilerParams(
            # batch tiles independent (2-TC split on v7x); time is sequential.
            dimension_semantics=("parallel", "arbitrary"),
            vmem_limit_bytes=vmem_limit,
        ),
    )(x_proj, w_h)

    # Lane-sparse (B, 1) FC stays in XLA on the lane-dense kernel output.
    return h_final[:, :H] @ params["w_fc"] + params["b_fc"]


def ligru_decoder_reference(x, params):
    """Pure-JAX reference mirroring the PyTorch forward (f32 throughout)."""
    B, T, I = x.shape
    H = params["w_h2z"].shape[0]
    h = jnp.zeros((B, H), jnp.float32)
    for t in range(T):
        x_t = x[:, t, :]
        z = jax.nn.sigmoid(
            x_t @ params["w_x2z"] + params["b_x2z"] + h @ params["w_h2z"]
        )
        hc = jnp.maximum(
            x_t @ params["w_x2h"] + params["b_x2h"] + h @ params["w_h2h"], 0.0
        )
        h = (1.0 - z) * h + z * hc
    return h @ params["w_fc"] + params["b_fc"]


def init_params(key, input_size, hidden_size):
    ks = jax.random.split(key, 8)
    scale = 0.1
    return {
        "w_x2z": scale * jax.random.normal(ks[0], (input_size, hidden_size), jnp.float32),
        "b_x2z": scale * jax.random.normal(ks[1], (1, hidden_size), jnp.float32),
        "w_h2z": scale * jax.random.normal(ks[2], (hidden_size, hidden_size), jnp.float32),
        "w_x2h": scale * jax.random.normal(ks[3], (input_size, hidden_size), jnp.float32),
        "b_x2h": scale * jax.random.normal(ks[4], (1, hidden_size), jnp.float32),
        "w_h2h": scale * jax.random.normal(ks[5], (hidden_size, hidden_size), jnp.float32),
        "w_fc": scale * jax.random.normal(ks[6], (hidden_size, 1), jnp.float32),
        "b_fc": scale * jax.random.normal(ks[7], (1, 1), jnp.float32),
    }


if __name__ == "__main__":
    B, T, I, H = 8, 8, 16, 32
    key = jax.random.PRNGKey(0)
    kx, kp = jax.random.split(key)
    x = jax.random.normal(kx, (B, T, I), jnp.float32)
    params = init_params(kp, I, H)

    ref = ligru_decoder_reference(x, params)

    # f32 streaming: bit-accurate path, tight tolerance.
    out_f32 = jax.block_until_ready(
        ligru_decoder_forward(x, params, stream_dtype=jnp.float32)
    )
    assert out_f32.shape == (B, 1)
    assert jnp.allclose(out_f32, ref, atol=1e-5, rtol=1e-4), (out_f32, ref)

    # bf16 streaming (default, production path): looser tolerance.
    out_bf16 = jax.block_until_ready(ligru_decoder_forward(x, params))
    assert out_bf16.shape == (B, 1)
    assert jnp.allclose(out_bf16, ref, atol=5e-2, rtol=5e-2), (out_bf16, ref)

    print("KERNEL_OK")
</pallas_src>

<mosaic_0001>
module attributes {stable_mosaic.version = 11 : i64} {
  func.func @_ligru_recurrence_kernel(%arg0: i32, %arg1: i32, %arg2: memref<8x8x256xf32, #tpu.memory_space<vmem>>, %arg3: memref<128x256xf32, #tpu.memory_space<vmem>>, %arg4: memref<8x128xf32, #tpu.memory_space<vmem>>) attributes {dimension_semantics = [#tpu.dimension_semantics<parallel>, #tpu.dimension_semantics<arbitrary>], iteration_bounds = array<i64: 1, 1>, scalar_prefetch = 0 : i64, scratch_operands = 0 : i64, tpu.core_type = #tpu.core_type<tc>, window_params = [{transform_indices = @transform_0, window_bounds = array<i64: 8, 8, 256>}, {pipeline_mode = #tpu.pipeline_mode<synchronous>, transform_indices = @transform_1, window_bounds = array<i64: 128, 256>}, {transform_indices = @transform_2, window_bounds = array<i64: 8, 128>}]} {
    %c0_i32 = arith.constant 0 : i32
    %0 = arith.cmpi eq, %arg1, %c0_i32 : i32
    %1 = arith.extui %0 : i1 to i32
    %c0_i32_0 = arith.constant 0 : i32
    %2 = arith.cmpi ne, %1, %c0_i32_0 : i32
    scf.if %2 {
      %cst_46 = arith.constant 0.000000e+00 : f32
      %142 = vector.broadcast %cst_46 : f32 to vector<8x128xf32>
      %c0_47 = arith.constant 0 : index
      %c0_48 = arith.constant 0 : index
      %143 = vector.load %arg4[%c0_47, %c0_48] : memref<8x128xf32, #tpu.memory_space<vmem>>, vector<8x128xf32>
      tpu.vector_store %arg4[%c0_47, %c0_48], %142 {strides = array<i32>} : memref<8x128xf32, #tpu.memory_space<vmem>>, vector<8x128xf32>,
    } else {
    }
    %c0 = arith.constant 0 : index
    %c0_1 = arith.constant 0 : index
    %3 = vector.load %arg3[%c0, %c0_1] : memref<128x256xf32, #tpu.memory_space<vmem>>, vector<128x256xf32>
    %c0_2 = arith.constant 0 : index
    %c0_3 = arith.constant 0 : index
    %4 = vector.load %arg4[%c0_2, %c0_3] : memref<8x128xf32, #tpu.memory_space<vmem>>, vector<8x128xf32>
    %c0_i32_4 = arith.constant 0 : i32
    %5 = arith.index_cast %c0_i32_4 : i32 to index
    %c0_5 = arith.constant 0 : index
    %c0_6 = arith.constant 0 : index
    %6 = vector.load %arg2[%5, %c0_5, %c0_6] : memref<8x8x256xf32, #tpu.memory_space<vmem>>, vector<1x8x256xf32>
    %7 = vector.shape_cast %6 : vector<1x8x256xf32> to vector<8x256xf32>
    %cst = arith.constant dense<0.000000e+00> : vector<8x256xf32>
    %8 = tpu.matmul %4, %3, %cst {dimension_numbers = #tpu.dot_dimension_numbers<[1], [0], [0], [1], [0, 0, 1, 1], [], []>} : vector<8x128xf32>, vector<128x256xf32>, vector<8x256xf32> -> vector<8x256xf32>
    %9 = arith.addf %7, %8 : vector<8x256xf32>
    %10 = vector.extract_strided_slice %9 {offsets = [0, 0], sizes = [8, 128], strides = [1, 1]} : vector<8x256xf32> to vector<8x128xf32>
    %11 = arith.negf %10 : vector<8x128xf32>
    %12 = math.exp %11 : vector<8x128xf32>
    %cst_7 = arith.constant 1.000000e+00 : f32
    %13 = vector.broadcast %cst_7 : f32 to vector<8x128xf32>
    %14 = arith.addf %13, %12 : vector<8x128xf32>
    %15 = arith.divf %13, %14 : vector<8x128xf32>
    %16 = vector.extract_strided_slice %9 {offsets = [0, 128], sizes = [8, 128], strides = [1, 1]} : vector<8x256xf32> to vector<8x128xf32>
    %cst_8 = arith.constant 0.000000e+00 : f32
    %17 = vector.broadcast %cst_8 : f32 to vector<8x128xf32>
    %18 = arith.maximumf %16, %17 : vector<8x128xf32>
    %19 = arith.subf %18, %4 : vector<8x128xf32>
    %20 = arith.mulf %15, %19 : vector<8x128xf32>
    %21 = arith.addf %4, %20 : vector<8x128xf32>
    %c1_i32 = arith.constant 1 : i32
    %22 = arith.index_cast %c1_i32 : i32 to index
    %c0_9 = arith.constant 0 : index
    %c0_10 = arith.constant 0 : index
    %23 = vector.load %arg2[%22, %c0_9, %c0_10] : memref<8x8x256xf32, #tpu.memory_space<vmem>>, vector<1x8x256xf32>
    %24 = vector.shape_cast %23 : vector<1x8x256xf32> to vector<8x256xf32>
    %cst_11 = arith.constant dense<0.000000e+00> : vector<8x256xf32>
    %25 = tpu.matmul %21, %3, %cst_11 {dimension_numbers = #tpu.dot_dimension_numbers<[1], [0], [0], [1], [0, 0, 1, 1], [], []>} : vector<8x128xf32>, vector<128x256xf32>, vector<8x256xf32> -> vector<8x256xf32>
    %26 = arith.addf %24, %25 : vector<8x256xf32>
    %27 = vector.extract_strided_slice %26 {offsets = [0, 0], sizes = [8, 128], strides = [1, 1]} : vector<8x256xf32> to vector<8x128xf32>
    %28 = arith.negf %27 : vector<8x128xf32>
    %29 = math.exp %28 : vector<8x128xf32>
    %cst_12 = arith.constant 1.000000e+00 : f32
    %30 = vector.broadcast %cst_12 : f32 to vector<8x128xf32>
    %31 = arith.addf %30, %29 : vector<8x128xf32>
    %32 = arith.divf %30, %31 : vector<8x128xf32>
    %33 = vector.extract_strided_slice %26 {offsets = [0, 128], sizes = [8, 128], strides = [1, 1]} : vector<8x256xf32> to vector<8x128xf32>
    %cst_13 = arith.constant 0.000000e+00 : f32
    %34 = vector.broadcast %cst_13 : f32 to vector<8x128xf32>
    %35 = arith.maximumf %33, %34 : vector<8x128xf32>
    %36 = arith.subf %35, %21 : vector<8x128xf32>
    %37 = arith.mulf %32, %36 : vector<8x128xf32>
    %38 = arith.addf %21, %37 : vector<8x128xf32>
    %c2_i32 = arith.constant 2 : i32
    %39 = arith.index_cast %c2_i32 : i32 to index
    %c0_14 = arith.constant 0 : index
    %c0_15 = arith.constant 0 : index
    %40 = vector.load %arg2[%39, %c0_14, %c0_15] : memref<8x8x256xf32, #tpu.memory_space<vmem>>, vector<1x8x256xf32>
    %41 = vector.shape_cast %40 : vector<1x8x256xf32> to vector<8x256xf32>
    %cst_16 = arith.constant dense<0.000000e+00> : vector<8x256xf32>
    %42 = tpu.matmul %38, %3, %cst_16 {dimension_numbers = #tpu.dot_dimension_numbers<[1], [0], [0], [1], [0, 0, 1, 1], [], []>} : vector<8x128xf32>, vector<128x256xf32>, vector<8x256xf32> -> vector<8x256xf32>
    %43 = arith.addf %41, %42 : vector<8x256xf32>
    %44 = vector.extract_strided_slice %43 {offsets = [0, 0], sizes = [8, 128], strides = [1, 1]} : vector<8x256xf32> to vector<8x128xf32>
    %45 = arith.negf %44 : vector<8x128xf32>
    %46 = math.exp %45 : vector<8x128xf32>
    %cst_17 = arith.constant 1.000000e+00 : f32
    %47 = vector.broadcast %cst_17 : f32 to vector<8x128xf32>
    %48 = arith.addf %47, %46 : vector<8x128xf32>
    %49 = arith.divf %47, %48 : vector<8x128xf32>
    %50 = vector.extract_strided_slice %43 {offsets = [0, 128], sizes = [8, 128], strides = [1, 1]} : vector<8x256xf32> to vector<8x128xf32>
    %cst_18 = arith.constant 0.000000e+00 : f32
    %51 = vector.broadcast %cst_18 : f32 to vector<8x128xf32>
    %52 = arith.maximumf %50, %51 : vector<8x128xf32>
    %53 = arith.subf %52, %38 : vector<8x128xf32>
    %54 = arith.mulf %49, %53 : vector<8x128xf32>
    %55 = arith.addf %38, %54 : vector<8x128xf32>
    %c3_i32 = arith.constant 3 : i32
    %56 = arith.index_cast %c3_i32 : i32 to index
    %c0_19 = arith.constant 0 : index
    %c0_20 = arith.constant 0 : index
    %57 = vector.load %arg2[%56, %c0_19, %c0_20] : memref<8x8x256xf32, #tpu.memory_space<vmem>>, vector<1x8x256xf32>
    %58 = vector.shape_cast %57 : vector<1x8x256xf32> to vector<8x256xf32>
    %cst_21 = arith.constant dense<0.000000e+00> : vector<8x256xf32>
    %59 = tpu.matmul %55, %3, %cst_21 {dimension_numbers = #tpu.dot_dimension_numbers<[1], [0], [0], [1], [0, 0, 1, 1], [], []>} : vector<8x128xf32>, vector<128x256xf32>, vector<8x256xf32> -> vector<8x256xf32>
    %60 = arith.addf %58, %59 : vector<8x256xf32>
    %61 = vector.extract_strided_slice %60 {offsets = [0, 0], sizes = [8, 128], strides = [1, 1]} : vector<8x256xf32> to vector<8x128xf32>
    %62 = arith.negf %61 : vector<8x128xf32>
    %63 = math.exp %62 : vector<8x128xf32>
    %cst_22 = arith.constant 1.000000e+00 : f32
    %64 = vector.broadcast %cst_22 : f32 to vector<8x128xf32>
    %65 = arith.addf %64, %63 : vector<8x128xf32>
    %66 = arith.divf %64, %65 : vector<8x128xf32>
    %67 = vector.extract_strided_slice %60 {offsets = [0, 128], sizes = [8, 128], strides = [1, 1]} : vector<8x256xf32> to vector<8x128xf32>
    %cst_23 = arith.constant 0.000000e+00 : f32
    %68 = vector.broadcast %cst_23 : f32 to vector<8x128xf32>
    %69 = arith.maximumf %67, %68 : vector<8x128xf32>
    %70 = arith.subf %69, %55 : vector<8x128xf32>
    %71 = arith.mulf %66, %70 : vector<8x128xf32>
    %72 = arith.addf %55, %71 : vector<8x128xf32>
    %c4_i32 = arith.constant 4 : i32
    %73 = arith.index_cast %c4_i32 : i32 to index
    %c0_24 = arith.constant 0 : index
    %c0_25 = arith.constant 0 : index
    %74 = vector.load %arg2[%73, %c0_24, %c0_25] : memref<8x8x256xf32, #tpu.memory_space<vmem>>, vector<1x8x256xf32>
    %75 = vector.shape_cast %74 : vector<1x8x256xf32> to vector<8x256xf32>
    %cst_26 = arith.constant dense<0.000000e+00> : vector<8x256xf32>
    %76 = tpu.matmul %72, %3, %cst_26 {dimension_numbers = #tpu.dot_dimension_numbers<[1], [0], [0], [1], [0, 0, 1, 1], [], []>} : vector<8x128xf32>, vector<128x256xf32>, vector<8x256xf32> -> vector<8x256xf32>
    %77 = arith.addf %75, %76 : vector<8x256xf32>
    %78 = vector.extract_strided_slice %77 {offsets = [0, 0], sizes = [8, 128], strides = [1, 1]} : vector<8x256xf32> to vector<8x128xf32>
    %79 = arith.negf %78 : vector<8x128xf32>
    %80 = math.exp %79 : vector<8x128xf32>
    %cst_27 = arith.constant 1.000000e+00 : f32
    %81 = vector.broadcast %cst_27 : f32 to vector<8x128xf32>
    %82 = arith.addf %81, %80 : vector<8x128xf32>
    %83 = arith.divf %81, %82 : vector<8x128xf32>
    %84 = vector.extract_strided_slice %77 {offsets = [0, 128], sizes = [8, 128], strides = [1, 1]} : vector<8x256xf32> to vector<8x128xf32>
    %cst_28 = arith.constant 0.000000e+00 : f32
    %85 = vector.broadcast %cst_28 : f32 to vector<8x128xf32>
    %86 = arith.maximumf %84, %85 : vector<8x128xf32>
    %87 = arith.subf %86, %72 : vector<8x128xf32>
    %88 = arith.mulf %83, %87 : vector<8x128xf32>
    %89 = arith.addf %72, %88 : vector<8x128xf32>
    %c5_i32 = arith.constant 5 : i32
    %90 = arith.index_cast %c5_i32 : i32 to index
    %c0_29 = arith.constant 0 : index
    %c0_30 = arith.constant 0 : index
    %91 = vector.load %arg2[%90, %c0_29, %c0_30] : memref<8x8x256xf32, #tpu.memory_space<vmem>>, vector<1x8x256xf32>
    %92 = vector.shape_cast %91 : vector<1x8x256xf32> to vector<8x256xf32>
    %cst_31 = arith.constant dense<0.000000e+00> : vector<8x256xf32>
    %93 = tpu.matmul %89, %3, %cst_31 {dimension_numbers = #tpu.dot_dimension_numbers<[1], [0], [0], [1], [0, 0, 1, 1], [], []>} : vector<8x128xf32>, vector<128x256xf32>, vector<8x256xf32> -> vector<8x256xf32>
    %94 = arith.addf %92, %93 : vector<8x256xf32>
    %95 = vector.extract_strided_slice %94 {offsets = [0, 0], sizes = [8, 128], strides = [1, 1]} : vector<8x256xf32> to vector<8x128xf32>
    %96 = arith.negf %95 : vector<8x128xf32>
    %97 = math.exp %96 : vector<8x128xf32>
    %cst_32 = arith.constant 1.000000e+00 : f32
    %98 = vector.broadcast %cst_32 : f32 to vector<8x128xf32>
    %99 = arith.addf %98, %97 : vector<8x128xf32>
    %100 = arith.divf %98, %99 : vector<8x128xf32>
    %101 = vector.extract_strided_slice %94 {offsets = [0, 128], sizes = [8, 128], strides = [1, 1]} : vector<8x256xf32> to vector<8x128xf32>
    %cst_33 = arith.constant 0.000000e+00 : f32
    %102 = vector.broadcast %cst_33 : f32 to vector<8x128xf32>
    %103 = arith.maximumf %101, %102 : vector<8x128xf32>
    %104 = arith.subf %103, %89 : vector<8x128xf32>
    %105 = arith.mulf %100, %104 : vector<8x128xf32>
    %106 = arith.addf %89, %105 : vector<8x128xf32>
    %c6_i32 = arith.constant 6 : i32
    %107 = arith.index_cast %c6_i32 : i32 to index
    %c0_34 = arith.constant 0 : index
    %c0_35 = arith.constant 0 : index
    %108 = vector.load %arg2[%107, %c0_34, %c0_35] : memref<8x8x256xf32, #tpu.memory_space<vmem>>, vector<1x8x256xf32>
    %109 = vector.shape_cast %108 : vector<1x8x256xf32> to vector<8x256xf32>
    %cst_36 = arith.constant dense<0.000000e+00> : vector<8x256xf32>
    %110 = tpu.matmul %106, %3, %cst_36 {dimension_numbers = #tpu.dot_dimension_numbers<[1], [0], [0], [1], [0, 0, 1, 1], [], []>} : vector<8x128xf32>, vector<128x256xf32>, vector<8x256xf32> -> vector<8x256xf32>
    %111 = arith.addf %109, %110 : vector<8x256xf32>
    %112 = vector.extract_strided_slice %111 {offsets = [0, 0], sizes = [8, 128], strides = [1, 1]} : vector<8x256xf32> to vector<8x128xf32>
    %113 = arith.negf %112 : vector<8x128xf32>
    %114 = math.exp %113 : vector<8x128xf32>
    %cst_37 = arith.constant 1.000000e+00 : f32
    %115 = vector.broadcast %cst_37 : f32 to vector<8x128xf32>
    %116 = arith.addf %115, %114 : vector<8x128xf32>
    %117 = arith.divf %115, %116 : vector<8x128xf32>
    %118 = vector.extract_strided_slice %111 {offsets = [0, 128], sizes = [8, 128], strides = [1, 1]} : vector<8x256xf32> to vector<8x128xf32>
    %cst_38 = arith.constant 0.000000e+00 : f32
    %119 = vector.broadcast %cst_38 : f32 to vector<8x128xf32>
    %120 = arith.maximumf %118, %119 : vector<8x128xf32>
    %121 = arith.subf %120, %106 : vector<8x128xf32>
    %122 = arith.mulf %117, %121 : vector<8x128xf32>
    %123 = arith.addf %106, %122 : vector<8x128xf32>
    %c7_i32 = arith.constant 7 : i32
    %124 = arith.index_cast %c7_i32 : i32 to index
    %c0_39 = arith.constant 0 : index
    %c0_40 = arith.constant 0 : index
    %125 = vector.load %arg2[%124, %c0_39, %c0_40] : memref<8x8x256xf32, #tpu.memory_space<vmem>>, vector<1x8x256xf32>
    %126 = vector.shape_cast %125 : vector<1x8x256xf32> to vector<8x256xf32>
    %cst_41 = arith.constant dense<0.000000e+00> : vector<8x256xf32>
    %127 = tpu.matmul %123, %3, %cst_41 {dimension_numbers = #tpu.dot_dimension_numbers<[1], [0], [0], [1], [0, 0, 1, 1], [], []>} : vector<8x128xf32>, vector<128x256xf32>, vector<8x256xf32> -> vector<8x256xf32>
    %128 = arith.addf %126, %127 : vector<8x256xf32>
    %129 = vector.extract_strided_slice %128 {offsets = [0, 0], sizes = [8, 128], strides = [1, 1]} : vector<8x256xf32> to vector<8x128xf32>
    %130 = arith.negf %129 : vector<8x128xf32>
    %131 = math.exp %130 : vector<8x128xf32>
    %cst_42 = arith.constant 1.000000e+00 : f32
    %132 = vector.broadcast %cst_42 : f32 to vector<8x128xf32>
    %133 = arith.addf %132, %131 : vector<8x128xf32>
    %134 = arith.divf %132, %133 : vector<8x128xf32>
    %135 = vector.extract_strided_slice %128 {offsets = [0, 128], sizes = [8, 128], strides = [1, 1]} : vector<8x256xf32> to vector<8x128xf32>
    %cst_43 = arith.constant 0.000000e+00 : f32
    %136 = vector.broadcast %cst_43 : f32 to vector<8x128xf32>
    %137 = arith.maximumf %135, %136 : vector<8x128xf32>
    %138 = arith.subf %137, %123 : vector<8x128xf32>
    %139 = arith.mulf %134, %138 : vector<8x128xf32>
    %140 = arith.addf %123, %139 : vector<8x128xf32>
    %c8_i32 = arith.constant 8 : i32
    %c0_44 = arith.constant 0 : index
    %c0_45 = arith.constant 0 : index
    %141 = vector.load %arg4[%c0_44, %c0_45] : memref<8x128xf32, #tpu.memory_space<vmem>>, vector<8x128xf32>
    tpu.vector_store %arg4[%c0_44, %c0_45], %140 {strides = array<i32>} : memref<8x128xf32, #tpu.memory_space<vmem>>, vector<8x128xf32>,
    return
  }
  func.func @transform_0(%arg0: i32, %arg1: i32) -> (i32, i32, i32) {
    %c0_i32 = arith.constant 0 : i32
    %c0_i32_0 = arith.constant 0 : i32
    return %arg1, %arg0, %c0_i32 : i32, i32, i32
  }
  func.func @transform_1(%arg0: i32, %arg1: i32) -> (i32, i32) {
    %c0_i32 = arith.constant 0 : i32
    %c0_i32_0 = arith.constant 0 : i32
    %c0_i32_1 = arith.constant 0 : i32
    return %c0_i32, %c0_i32_0 : i32, i32
  }
  func.func @transform_2(%arg0: i32, %arg1: i32) -> (i32, i32) {
    %c0_i32 = arith.constant 0 : i32
    %c0_i32_0 = arith.constant 0 : i32
    return %arg0, %c0_i32 : i32, i32
  }
}

</mosaic_0001>

<llo_original>
// kernel: tpu_custom_call.1
$region0: #{tpu_custom_call.1}
  #allocation0 [shape = 'u32[]', space=smem, size = 0x4, offset = 0x4, fixed_abs, tag = 'smem constant byte address 0x4 - core index']
  #allocation1 [shape = 'u32[144,128]{1,0:T(1,128)}', space=vmem, size = 0x12000, scoped, tag = 'internal scratch']
  %s0 = inlined_call_operand.hbm [shape: f32[8,8,256], index: 0, kind: input, shape index: {}]
  %s1 = inlined_call_operand.hbm [shape: f32[128,256], index: 1, kind: input, shape index: {}]
  %s2 = inlined_call_operand.hbm [shape: f32[8,128], index: 2, kind: output, shape index: {}]
  %s3 = sld [smem:[#allocation0]]
  $region30: #{tpu_custom_call.1} parent=0
    _
  %s5 = ssub.s32 1, %s3
  %s6 = scalar_select 0, %s5, %s3
  $region1: #{tpu_custom_call.1} parent=0
    #allocation2 [shape = 'u8[65536]{0}', space=vmem, size = 0x10000, scoped, tag = 'input window, operand 0, single buffered']
    #allocation3 [shape = 's32[1]{0}', space=sflag, size = 0x4, scoped, tag = 'scoped memory for tpu_custom_call.1']
    #allocation4 [shape = 's32[1]{0}', space=sflag, size = 0x4, scoped, tag = 'scoped memory for tpu_custom_call.1']
    #allocation5 [shape = 'u8[131072]{0}', space=vmem, size = 0x20000, scoped, tag = 'input window, operand 1, single buffered']
    #allocation6 [shape = 's32[1]{0}', space=sflag, size = 0x4, scoped, tag = 'scoped memory for tpu_custom_call.1']
    #allocation7 [shape = 'u8[4096]{0}', space=vmem, size = 0x1000, scoped, tag = 'output window, operand 0, single buffered']
    %7 = vsyncpa [#allocation3], 0
    %8 = vsyncpa [#allocation6], 0
    %9 = vsyncpa [#allocation4], 0
    // Predicated region
    $region2: #{tpu_custom_call.1} parent=1 // pred_check
      _
    $region3: #{tpu_custom_call.1} parent=1 // pred_check_branch
      %11 = sbr.rel (0) target = $region5
    $region4: #{tpu_custom_call.1} parent=1 // pred_region
      %s13 = ssub.s32 2048, 2048
      %14 = vsyncadd [#allocation3], %s13
      %s15 = sshll.u32 [#allocation2], 4
      %s16 = int_to_ptr.vmem [resolvable:$true] %s15
      %21 = dma.hbm_to_vmem [thread:$0]  %s0, 2048, %s16, [#allocation3], 256, 256, 16
    $region5: #{tpu_custom_call.1} parent=1 // pred_fallthru
      _
    // Predicated region
    $region6: #{tpu_custom_call.1} parent=1 // pred_check
      _
    $region7: #{tpu_custom_call.1} parent=1 // pred_check_branch
      %23 = sbr.rel (0) target = $region9
    $region8: #{tpu_custom_call.1} parent=1 // pred_region
      %s25 = ssub.s32 4096, 4096
      %26 = vsyncadd [#allocation6], %s25
      %s27 = sshll.u32 [#allocation5], 4
      %s28 = int_to_ptr.vmem [resolvable:$true] %s27
      %33 = dma.hbm_to_vmem [thread:$0]  %s1, 4096, %s28, [#allocation6], 256, 256, 16
    $region9: #{tpu_custom_call.1} parent=1 // pred_fallthru
      _
    // Predicated region
    $region10: #{tpu_custom_call.1} parent=1 // pred_check
      _
    $region11: #{tpu_custom_call.1} parent=1 // pred_check_branch
      %35 = sbr.rel (0) target = $region13
    $region12: #{tpu_custom_call.1} parent=1 // pred_region
      %36 = dma.done [#allocation3], 2048
    $region13: #{tpu_custom_call.1} parent=1 // pred_fallthru
      _
    // Predicated region
    $region14: #{tpu_custom_call.1} parent=1 // pred_check
      _
    $region15: #{tpu_custom_call.1} parent=1 // pred_check_branch
      %38 = sbr.rel (0) target = $region17
    $region16: #{tpu_custom_call.1} parent=1 // pred_region
      %39 = dma.done [#allocation6], 4096
    $region17: #{tpu_custom_call.1} parent=1 // pred_fallthru
      _
    %p40 = scmp.eq.s32.totalorder 0, 0
    // Predicated region
    $region18: #{tpu_custom_call.1} parent=1 // pred_check
      %p41 = pneg %p40
    $region19: #{tpu_custom_call.1} parent=1 // pred_check_branch
      %43 = sbr.rel (%p41) target = $region21
    $region20: #{tpu_custom_call.1} parent=1 // pred_region
      %44 = vst [vmem:[#allocation7] sm:$0xff] 0.0
    $region21: #{tpu_custom_call.1} parent=1 // pred_fallthru
      _
    %v45 = vld [vmem:[#allocation5] sm:$0xff]
    %v46 = vld [vmem:[#allocation5 + $0x8] sm:$0xff]
    %v47 = vld [vmem:[#allocation5 + $0x10] sm:$0xff]
    %v48 = vld [vmem:[#allocation5 + $0x18] sm:$0xff]
    %v49 = vld [vmem:[#allocation5 + $0x20] sm:$0xff]
    %v50 = vld [vmem:[#allocation5 + $0x28] sm:$0xff]
    %v51 = vld [vmem:[#allocation5 + $0x30] sm:$0xff]
    %v52 = vld [vmem:[#allocation5 + $0x38] sm:$0xff]
    %v53 = vld [vmem:[#allocation5 + $0x40] sm:$0xff]
    %v54 = vld [vmem:[#allocation5 + $0x48] sm:$0xff]
    %v55 = vld [vmem:[#allocation5 + $0x50] sm:$0xff]
    %v56 = vld [vmem:[#allocation5 + $0x58] sm:$0xff]
    %v57 = vld [vmem:[#allocation5 + $0x60] sm:$0xff]
    %v58 = vld [vmem:[#allocation5 + $0x68] sm:$0xff]
    %v59 = vld [vmem:[#allocation5 + $0x70] sm:$0xff]
    %v60 = vld [vmem:[#allocation5 + $0x78] sm:$0xff]
    %v61 = vld [vmem:[#allocation5 + $0x80] sm:$0xff]
    %v62 = vld [vmem:[#allocation5 + $0x88] sm:$0xff]
    %v63 = vld [vmem:[#allocation5 + $0x90] sm:$0xff]
    %v64 = vld [vmem:[#allocation5 + $0x98] sm:$0xff]
    %v65 = vld [vmem:[#allocation5 + $0xa0] sm:$0xff]
    %v66 = vld [vmem:[#allocation5 + $0xa8] sm:$0xff]
    %v67 = vld [vmem:[#allocation5 + $0xb0] sm:$0xff]
    %v68 = vld [vmem:[#allocation5 + $0xb8] sm:$0xff]
    %v69 = vld [vmem:[#allocation5 + $0xc0] sm:$0xff]
    %v70 = vld [vmem:[#allocation5 + $0xc8] sm:$0xff]
    %v71 = vld [vmem:[#allocation5 + $0xd0] sm:$0xff]
    %v72 = vld [vmem:[#allocation5 + $0xd8] sm:$0xff]
    %v73 = vld [vmem:[#allocation5 + $0xe0] sm:$0xff]
    %v74 = vld [vmem:[#allocation5 + $0xe8] sm:$0xff]
    %v75 = vld [vmem:[#allocation5 + $0xf0] sm:$0xff]
    %v76 = vld [vmem:[#allocation5 + $0xf8] sm:$0xff]
    %v77 = vld [vmem:[#allocation7] sm:$0xff]
    %v78 = vld [vmem:[#allocation2] sm:$0xff]
    %v79 = vld [vmem:[#allocation2 + $0x8] sm:$0xff]
    %80 = vmatprep.subr.mxu0 %v76
    %81 = vmatpush1.msra.mxu0 %v75
    %82 = vmatprep.subr.mxu0 %v74
    %83 = vmatpush1.msra.mxu0 %v73
    %84 = vmatprep.subr.mxu0 %v72
    %85 = vmatpush1.msra.mxu0 %v71
    %86 = vmatprep.subr.mxu0 %v70
    %87 = vmatpush1.msra.mxu0 %v69
    %88 = vmatprep.subr.mxu0 %v68
    %89 = vmatpush1.msra.mxu0 %v67
    %90 = vmatprep.subr.mxu0 %v66
    %91 = vmatpush1.msra.mxu0 %v65
    %92 = vmatprep.subr.mxu0 %v64
    %93 = vmatpush1.msra.mxu0 %v63
    %94 = vmatprep.subr.mxu0 %v62
    %95 = vmatpush1.msra.mxu0 %v61
    %96 = vmatprep.subr.mxu0 %v60
    %97 = vmatpush1.msra.mxu0 %v59
    %98 = vmatprep.subr.mxu0 %v58
    %99 = vmatpush1.msra.mxu0 %v57
    %100 = vmatprep.subr.mxu0 %v56
    %101 = vmatpush1.msra.mxu0 %v55
    %102 = vmatprep.subr.mxu0 %v54
    %103 = vmatpush1.msra.mxu0 %v53
    %104 = vmatprep.subr.mxu0 %v52
    %105 = vmatpush1.msra.mxu0 %v51
    %106 = vmatprep.subr.mxu0 %v50
    %107 = vmatpush1.msra.mxu0 %v49
    %108 = vmatprep.subr.mxu0 %v48
    %109 = vmatpush1.msra.mxu0 %v47
    %110 = vmatprep.subr.mxu0 %v46
    %111 = vmatpush1.msra.mxu0 %v45
    %112 = vmatprep.subr.mxu0 0.0
    %113 = vmatpush2.msra.mxu0 0.0
    %114 = vmatprep.subr.mxu0 0.0
    %115 = vmatpush2.msra.mxu0 0.0
    %116 = vmatprep.subr.mxu0 0.0
    %117 = vmatpush2.msra.mxu0 0.0
    %118 = vmatprep.subr.mxu0 0.0
    %119 = vmatpush2.msra.mxu0 0.0
    %120 = vmatprep.subr.mxu0 0.0
    %121 = vmatpush2.msra.mxu0 0.0
    %122 = vmatprep.subr.mxu0 0.0
    %123 = vmatpush2.msra.mxu0 0.0
    %124 = vmatprep.subr.mxu0 0.0
    %125 = vmatpush2.msra.mxu0 0.0
    %126 = vmatprep.subr.mxu0 0.0
    %127 = vmatpush2.msra.mxu0 0.0
    %128 = vmatprep.subr.mxu0 0.0
    %129 = vmatpush2.msra.mxu0 0.0
    %130 = vmatprep.subr.mxu0 0.0
    %131 = vmatpush2.msra.mxu0 0.0
    %132 = vmatprep.subr.mxu0 0.0
    %133 = vmatpush2.msra.mxu0 0.0
    %134 = vmatprep.subr.mxu0 0.0
    %135 = vmatpush2.msra.mxu0 0.0
    %136 = vmatprep.subr.mxu0 0.0
    %137 = vmatpush2.msra.mxu0 0.0
    %138 = vmatprep.subr.mxu0 0.0
    %139 = vmatpush2.msra.mxu0 0.0
    %140 = vmatprep.subr.mxu0 0.0
    %141 = vmatpush2.msra.mxu0 0.0
    %142 = vmatprep.subr.mxu0 0.0
    %143 = vmatpush2.msra.mxu0 0.0
    %144 = vmatprep.mubr.f32.mxu0 0.0
    %145 = vmatmul.mubr.f32.gmra.mxu0 %v77
    %v146 = vpop.f32.mrf.mxu0
    %v147 = vadd.f32 0.0, %v146
    %v148 = vpop.f32.mrf.mxu0
    %v149 = vadd.f32 0.0, %v148
    %150 = vdwg.mxu0
    %v151 = vadd.f32 %v78, %v147
    %v152 = vadd.f32 %v79, %v149
    %v153 = vxor.u32 %v151, 2147483648
    %v154 = vmul.f32 %v153, 1.442695
    %v155 = vpow.pop %v154
    %v156 = vadd.f32 %v155, 1.0
    %v157 = vrcp.pop %v156
    %v158 = vmul.f32 1.0, %v157
    %v159 = vmax.f32 %v152, 0.0
    %v160 = vsub.f32 %v159, %v77
    %v161 = vmul.f32 %v158, %v160
    %v162 = vadd.f32 %v77, %v161
    %s163 = scalar_lea.vmem [#allocation2], 16
    %v164 = vld [vmem:[%s163] sm:$0xff]
    %v165 = vld [vmem:[%s163 + $0x8] sm:$0xff]
    %166 = vmatprep.subr.mxu0 %v76
    %167 = vmatpush1.msra.mxu0 %v75
    %168 = vmatprep.subr.mxu0 %v74
    %169 = vmatpush1.msra.mxu0 %v73
    %170 = vmatprep.subr.mxu0 %v72
    %171 = vmatpush1.msra.mxu0 %v71
    %172 = vmatprep.subr.mxu0 %v70
    %173 = vmatpush1.msra.mxu0 %v69
    %174 = vmatprep.subr.mxu0 %v68
    %175 = vmatpush1.msra.mxu0 %v67
    %176 = vmatprep.subr.mxu0 %v66
    %177 = vmatpush1.msra.mxu0 %v65
    %178 = vmatprep.subr.mxu0 %v64
    %179 = vmatpush1.msra.mxu0 %v63
    %180 = vmatprep.subr.mxu0 %v62
    %181 = vmatpush1.msra.mxu0 %v61
    %182 = vmatprep.subr.mxu0 %v60
    %183 = vmatpush1.msra.mxu0 %v59
    %184 = vmatprep.subr.mxu0 %v58
    %185 = vmatpush1.msra.mxu0 %v57
    %186 = vmatprep.subr.mxu0 %v56
    %187 = vmatpush1.msra.mxu0 %v55
    %188 = vmatprep.subr.mxu0 %v54
    %189 = vmatpush1.msra.mxu0 %v53
    %190 = vmatprep.subr.mxu0 %v52
    %191 = vmatpush1.msra.mxu0 %v51
    %192 = vmatprep.subr.mxu0 %v50
    %193 = vmatpush1.msra.mxu0 %v49
    %194 = vmatprep.subr.mxu0 %v48
    %195 = vmatpush1.msra.mxu0 %v47
    %196 = vmatprep.subr.mxu0 %v46
    %197 = vmatpush1.msra.mxu0 %v45
    %198 = vmatprep.subr.mxu0 0.0
    %199 = vmatpush2.msra.mxu0 0.0
    %200 = vmatprep.subr.mxu0 0.0
    %201 = vmatpush2.msra.mxu0 0.0
    %202 = vmatprep.subr.mxu0 0.0
    %203 = vmatpush2.msra.mxu0 0.0
    %204 = vmatprep.subr.mxu0 0.0
    %205 = vmatpush2.msra.mxu0 0.0
    %206 = vmatprep.subr.mxu0 0.0
    %207 = vmatpush2.msra.mxu0 0.0
    %208 = vmatprep.subr.mxu0 0.0
    %209 = vmatpush2.msra.mxu0 0.0
    %210 = vmatprep.subr.mxu0 0.0
    %211 = vmatpush2.msra.mxu0 0.0
    %212 = vmatprep.subr.mxu0 0.0
    %213 = vmatpush2.msra.mxu0 0.0
    %214 = vmatprep.subr.mxu0 0.0
    %215 = vmatpush2.msra.mxu0 0.0
    %216 = vmatprep.subr.mxu0 0.0
    %217 = vmatpush2.msra.mxu0 0.0
    %218 = vmatprep.subr.mxu0 0.0
    %219 = vmatpush2.msra.mxu0 0.0
    %220 = vmatprep.subr.mxu0 0.0
    %221 = vmatpush2.msra.mxu0 0.0
    %222 = vmatprep.subr.mxu0 0.0
    %223 = vmatpush2.msra.mxu0 0.0
    %224 = vmatprep.subr.mxu0 0.0
    %225 = vmatpush2.msra.mxu0 0.0
    %226 = vmatprep.subr.mxu0 0.0
    %227 = vmatpush2.msra.mxu0 0.0
    %228 = vmatprep.subr.mxu0 0.0
    %229 = vmatpush2.msra.mxu0 0.0
    %230 = vmatprep.mubr.f32.mxu0 0.0
    %231 = vmatmul.mubr.f32.gmra.mxu0 %v162
    %v232 = vpop.f32.mrf.mxu0
    %v233 = vadd.f32 0.0, %v232
    %v234 = vpop.f32.mrf.mxu0
    %v235 = vadd.f32 0.0, %v234
    %236 = vdwg.mxu0
    %v237 = vadd.f32 %v164, %v233
    %v238 = vadd.f32 %v165, %v235
    %v239 = vxor.u32 %v237, 2147483648
    %v240 = vmul.f32 %v239, 1.442695
    %v241 = vpow.pop %v240
    %v242 = vadd.f32 %v241, 1.0
    %v243 = vrcp.pop %v242
    %v244 = vmul.f32 1.0, %v243
    %v245 = vmax.f32 %v238, 0.0
    %v246 = vsub.f32 %v245, %v162
    %v247 = vmul.f32 %v244, %v246
    %v248 = vadd.f32 %v162, %v247
    %s249 = scalar_lea.vmem [#allocation2], 32
    %v250 = vld [vmem:[%s249] sm:$0xff]
    %v251 = vld [vmem:[%s249 + $0x8] sm:$0xff]
    %252 = vmatprep.subr.mxu0 %v76
    %253 = vmatpush1.msra.mxu0 %v75
    %254 = vmatprep.subr.mxu0 %v74
    %255 = vmatpush1.msra.mxu0 %v73
    %256 = vmatprep.subr.mxu0 %v72
    %257 = vmatpush1.msra.mxu0 %v71
    %258 = vmatprep.subr.mxu0 %v70
    %259 = vmatpush1.msra.mxu0 %v69
    %260 = vmatprep.subr.mxu0 %v68
    %261 = vmatpush1.msra.mxu0 %v67
    %262 = vmatprep.subr.mxu0 %v66
    %263 = vmatpush1.msra.mxu0 %v65
    %264 = vmatprep.subr.mxu0 %v64
    %265 = vmatpush1.msra.mxu0 %v63
    %266 = vmatprep.subr.mxu0 %v62
    %267 = vmatpush1.msra.mxu0 %v61
    %268 = vmatprep.subr.mxu0 %v60
    %269 = vmatpush1.msra.mxu0 %v59
    %270 = vmatprep.subr.mxu0 %v58
    %271 = vmatpush1.msra.mxu0 %v57
    %272 = vmatprep.subr.mxu0 %v56
    %273 = vmatpush1.msra.mxu0 %v55
    %274 = vmatprep.subr.mxu0 %v54
    %275 = vmatpush1.msra.mxu0 %v53
    %276 = vmatprep.subr.mxu0 %v52
    %277 = vmatpush1.msra.mxu0 %v51
    %278 = vmatprep.subr.mxu0 %v50
    %279 = vmatpush1.msra.mxu0 %v49
    %280 = vmatprep.subr.mxu0 %v48
    %281 = vmatpush1.msra.mxu0 %v47
    %282 = vmatprep.subr.mxu0 %v46
    %283 = vmatpush1.msra.mxu0 %v45
    %284 = vmatprep.subr.mxu0 0.0
    %285 = vmatpush2.msra.mxu0 0.0
    %286 = vmatprep.subr.mxu0 0.0
    %287 = vmatpush2.msra.mxu0 0.0
    %288 = vmatprep.subr.mxu0 0.0
    %289 = vmatpush2.msra.mxu0 0.0
    %290 = vmatprep.subr.mxu0 0.0
    %291 = vmatpush2.msra.mxu0 0.0
    %292 = vmatprep.subr.mxu0 0.0
    %293 = vmatpush2.msra.mxu0 0.0
    %294 = vmatprep.subr.mxu0 0.0
    %295 = vmatpush2.msra.mxu0 0.0
    %296 = vmatprep.subr.mxu0 0.0
    %297 = vmatpush2.msra.mxu0 0.0
    %298 = vmatprep.subr.mxu0 0.0
    %299 = vmatpush2.msra.mxu0 0.0
    %300 = vmatprep.subr.mxu0 0.0
    %301 = vmatpush2.msra.mxu0 0.0
    %302 = vmatprep.subr.mxu0 0.0
    %303 = vmatpush2.msra.mxu0 0.0
    %304 = vmatprep.subr.mxu0 0.0
    %305 = vmatpush2.msra.mxu0 0.0
    %306 = vmatprep.subr.mxu0 0.0
    %307 = vmatpush2.msra.mxu0 0.0
    %308 = vmatprep.subr.mxu0 0.0
    %309 = vmatpush2.msra.mxu0 0.0
    %310 = vmatprep.subr.mxu0 0.0
    %311 = vmatpush2.msra.mxu0 0.0
    %312 = vmatprep.subr.mxu0 0.0
    %313 = vmatpush2.msra.mxu0 0.0
    %314 = vmatprep.subr.mxu0 0.0
    %315 = vmatpush2.msra.mxu0 0.0
    %316 = vmatprep.mubr.f32.mxu0 0.0
    %317 = vmatmul.mubr.f32.gmra.mxu0 %v248
    %v318 = vpop.f32.mrf.mxu0
    %v319 = vadd.f32 0.0, %v318
    %v320 = vpop.f32.mrf.mxu0
    %v321 = vadd.f32 0.0, %v320
    %322 = vdwg.mxu0
    %v323 = vadd.f32 %v250, %v319
    %v324 = vadd.f32 %v251, %v321
    %v325 = vxor.u32 %v323, 2147483648
    %v326 = vmul.f32 %v325, 1.442695
    %v327 = vpow.pop %v326
    %v328 = vadd.f32 %v327, 1.0
    %v329 = vrcp.pop %v328
    %v330 = vmul.f32 1.0, %v329
    %v331 = vmax.f32 %v324, 0.0
    %v332 = vsub.f32 %v331, %v248
    %v333 = vmul.f32 %v330, %v332
    %v334 = vadd.f32 %v248, %v333
    %s335 = scalar_lea.vmem [#allocation2], 48
    %v336 = vld [vmem:[%s335] sm:$0xff]
    %v337 = vld [vmem:[%s335 + $0x8] sm:$0xff]
    %338 = vmatprep.subr.mxu0 %v76
    %339 = vmatpush1.msra.mxu0 %v75
    %340 = vmatprep.subr.mxu0 %v74
    %341 = vmatpush1.msra.mxu0 %v73
    %342 = vmatprep.subr.mxu0 %v72
    %343 = vmatpush1.msra.mxu0 %v71
    %344 = vmatprep.subr.mxu0 %v70
    %345 = vmatpush1.msra.mxu0 %v69
    %346 = vmatprep.subr.mxu0 %v68
    %347 = vmatpush1.msra.mxu0 %v67
    %348 = vmatprep.subr.mxu0 %v66
    %349 = vmatpush1.msra.mxu0 %v65
    %350 = vmatprep.subr.mxu0 %v64
    %351 = vmatpush1.msra.mxu0 %v63
    %352 = vmatprep.subr.mxu0 %v62
    %353 = vmatpush1.msra.mxu0 %v61
    %354 = vmatprep.subr.mxu0 %v60
    %355 = vmatpush1.msra.mxu0 %v59
    %356 = vmatprep.subr.mxu0 %v58
    %357 = vmatpush1.msra.mxu0 %v57
    %358 = vmatprep.subr.mxu0 %v56
    %359 = vmatpush1.msra.mxu0 %v55
    %360 = vmatprep.subr.mxu0 %v54
    %361 = vmatpush1.msra.mxu0 %v53
    %362 = vmatprep.subr.mxu0 %v52
    %363 = vmatpush1.msra.mxu0 %v51
    %364 = vmatprep.subr.mxu0 %v50
    %365 = vmatpush1.msra.mxu0 %v49
    %366 = vmatprep.subr.mxu0 %v48
    %367 = vmatpush1.msra.mxu0 %v47
    %368 = vmatprep.subr.mxu0 %v46
    %369 = vmatpush1.msra.mxu0 %v45
    %370 = vmatprep.subr.mxu0 0.0
    %371 = vmatpush2.msra.mxu0 0.0
    %372 = vmatprep.subr.mxu0 0.0
    %373 = vmatpush2.msra.mxu0 0.0
    %374 = vmatprep.subr.mxu0 0.0
    %375 = vmatpush2.msra.mxu0 0.0
    %376 = vmatprep.subr.mxu0 0.0
    %377 = vmatpush2.msra.mxu0 0.0
    %378 = vmatprep.subr.mxu0 0.0
    %379 = vmatpush2.msra.mxu0 0.0
    %380 = vmatprep.subr.mxu0 0.0
    %381 = vmatpush2.msra.mxu0 0.0
    %382 = vmatprep.subr.mxu0 0.0
    %383 = vmatpush2.msra.mxu0 0.0
    %384 = vmatprep.subr.mxu0 0.0
    %385 = vmatpush2.msra.mxu0 0.0
    %386 = vmatprep.subr.mxu0 0.0
    %387 = vmatpush2.msra.mxu0 0.0
    %388 = vmatprep.subr.mxu0 0.0
    %389 = vmatpush2.msra.mxu0 0.0
    %390 = vmatprep.subr.mxu0 0.0
    %391 = vmatpush2.msra.mxu0 0.0
    %392 = vmatprep.subr.mxu0 0.0
    %393 = vmatpush2.msra.mxu0 0.0
    %394 = vmatprep.subr.mxu0 0.0
    %395 = vmatpush2.msra.mxu0 0.0
    %396 = vmatprep.subr.mxu0 0.0
    %397 = vmatpush2.msra.mxu0 0.0
    %398 = vmatprep.subr.mxu0 0.0
    %399 = vmatpush2.msra.mxu0 0.0
    %400 = vmatprep.subr.mxu0 0.0
    %401 = vmatpush2.msra.mxu0 0.0
    %402 = vmatprep.mubr.f32.mxu0 0.0
    %403 = vmatmul.mubr.f32.gmra.mxu0 %v334
    %v404 = vpop.f32.mrf.mxu0
    %v405 = vadd.f32 0.0, %v404
    %v406 = vpop.f32.mrf.mxu0
    %v407 = vadd.f32 0.0, %v406
    %408 = vdwg.mxu0
    %v409 = vadd.f32 %v336, %v405
    %v410 = vadd.f32 %v337, %v407
    %v411 = vxor.u32 %v409, 2147483648
    %v412 = vmul.f32 %v411, 1.442695
    %v413 = vpow.pop %v412
    %v414 = vadd.f32 %v413, 1.0
    %v415 = vrcp.pop %v414
    %v416 = vmul.f32 1.0, %v415
    %v417 = vmax.f32 %v410, 0.0
    %v418 = vsub.f32 %v417, %v334
    %v419 = vmul.f32 %v416, %v418
    %v420 = vadd.f32 %v334, %v419
    %s421 = scalar_lea.vmem [#allocation2], 64
    %v422 = vld [vmem:[%s421] sm:$0xff]
    %v423 = vld [vmem:[%s421 + $0x8] sm:$0xff]
    %424 = vmatprep.subr.mxu0 %v76
    %425 = vmatpush1.msra.mxu0 %v75
    %426 = vmatprep.subr.mxu0 %v74
    %427 = vmatpush1.msra.mxu0 %v73
    %428 = vmatprep.subr.mxu0 %v72
    %429 = vmatpush1.msra.mxu0 %v71
    %430 = vmatprep.subr.mxu0 %v70
    %431 = vmatpush1.msra.mxu0 %v69
    %432 = vmatprep.subr.mxu0 %v68
    %433 = vmatpush1.msra.mxu0 %v67
    %434 = vmatprep.subr.mxu0 %v66
    %435 = vmatpush1.msra.mxu0 %v65
    %436 = vmatprep.subr.mxu0 %v64
    %437 = vmatpush1.msra.mxu0 %v63
    %438 = vmatprep.subr.mxu0 %v62
    %439 = vmatpush1.msra.mxu0 %v61
    %440 = vmatprep.subr.mxu0 %v60
    %441 = vmatpush1.msra.mxu0 %v59
    %442 = vmatprep.subr.mxu0 %v58
    %443 = vmatpush1.msra.mxu0 %v57
    %444 = vmatprep.subr.mxu0 %v56
    %445 = vmatpush1.msra.mxu0 %v55
    %446 = vmatprep.subr.mxu0 %v54
    %447 = vmatpush1.msra.mxu0 %v53
    %448 = vmatprep.subr.mxu0 %v52
    %449 = vmatpush1.msra.mxu0 %v51
    %450 = vmatprep.subr.mxu0 %v50
    %451 = vmatpush1.msra.mxu0 %v49
    %452 = vmatprep.subr.mxu0 %v48
    %453 = vmatpush1.msra.mxu0 %v47
    %454 = vmatprep.subr.mxu0 %v46
    %455 = vmatpush1.msra.mxu0 %v45
    %456 = vmatprep.subr.mxu0 0.0
    %457 = vmatpush2.msra.mxu0 0.0
    %458 = vmatprep.subr.mxu0 0.0
    %459 = vmatpush2.msra.mxu0 0.0
    %460 = vmatprep.subr.mxu0 0.0
    %461 = vmatpush2.msra.mxu0 0.0
    %462 = vmatprep.subr.mxu0 0.0
    %463 = vmatpush2.msra.mxu0 0.0
    %464 = vmatprep.subr.mxu0 0.0
    %465 = vmatpush2.msra.mxu0 0.0
    %466 = vmatprep.subr.mxu0 0.0
    %467 = vmatpush2.msra.mxu0 0.0
    %468 = vmatprep.subr.mxu0 0.0
    %469 = vmatpush2.msra.mxu0 0.0
    %470 = vmatprep.subr.mxu0 0.0
    %471 = vmatpush2.msra.mxu0 0.0
    %472 = vmatprep.subr.mxu0 0.0
    %473 = vmatpush2.msra.mxu0 0.0
    %474 = vmatprep.subr.mxu0 0.0
    %475 = vmatpush2.msra.mxu0 0.0
    %476 = vmatprep.subr.mxu0 0.0
    %477 = vmatpush2.msra.mxu0 0.0
    %478 = vmatprep.subr.mxu0 0.0
    %479 = vmatpush2.msra.mxu0 0.0
    %480 = vmatprep.subr.mxu0 0.0
    %481 = vmatpush2.msra.mxu0 0.0
    %482 = vmatprep.subr.mxu0 0.0
    %483 = vmatpush2.msra.mxu0 0.0
    %484 = vmatprep.subr.mxu0 0.0
    %485 = vmatpush2.msra.mxu0 0.0
    %486 = vmatprep.subr.mxu0 0.0
    %487 = vmatpush2.msra.mxu0 0.0
    %488 = vmatprep.mubr.f32.mxu0 0.0
    %489 = vmatmul.mubr.f32.gmra.mxu0 %v420
    %v490 = vpop.f32.mrf.mxu0
    %v491 = vadd.f32 0.0, %v490
    %v492 = vpop.f32.mrf.mxu0
    %v493 = vadd.f32 0.0, %v492
    %494 = vdwg.mxu0
    %v495 = vadd.f32 %v422, %v491
    %v496 = vadd.f32 %v423, %v493
    %v497 = vxor.u32 %v495, 2147483648
    %v498 = vmul.f32 %v497, 1.442695
    %v499 = vpow.pop %v498
    %v500 = vadd.f32 %v499, 1.0
    %v501 = vrcp.pop %v500
    %v502 = vmul.f32 1.0, %v501
    %v503 = vmax.f32 %v496, 0.0
    %v504 = vsub.f32 %v503, %v420
    %v505 = vmul.f32 %v502, %v504
    %v506 = vadd.f32 %v420, %v505
    %s507 = scalar_lea.vmem [#allocation2], 80
    %v508 = vld [vmem:[%s507] sm:$0xff]
    %v509 = vld [vmem:[%s507 + $0x8] sm:$0xff]
    %510 = vmatprep.subr.mxu0 %v76
    %511 = vmatpush1.msra.mxu0 %v75
    %512 = vmatprep.subr.mxu0 %v74
    %513 = vmatpush1.msra.mxu0 %v73
    %514 = vmatprep.subr.mxu0 %v72
    %515 = vmatpush1.msra.mxu0 %v71
    %516 = vmatprep.subr.mxu0 %v70
    %517 = vmatpush1.msra.mxu0 %v69
    %518 = vmatprep.subr.mxu0 %v68
    %519 = vmatpush1.msra.mxu0 %v67
    %520 = vmatprep.subr.mxu0 %v66
    %521 = vmatpush1.msra.mxu0 %v65
    %522 = vmatprep.subr.mxu0 %v64
    %523 = vmatpush1.msra.mxu0 %v63
    %524 = vmatprep.subr.mxu0 %v62
    %525 = vmatpush1.msra.mxu0 %v61
    %526 = vmatprep.subr.mxu0 %v60
    %527 = vmatpush1.msra.mxu0 %v59
    %528 = vmatprep.subr.mxu0 %v58
    %529 = vmatpush1.msra.mxu0 %v57
    %530 = vmatprep.subr.mxu0 %v56
    %531 = vmatpush1.msra.mxu0 %v55
    %532 = vmatprep.subr.mxu0 %v54
    %533 = vmatpush1.msra.mxu0 %v53
    %534 = vmatprep.subr.mxu0 %v52
    %535 = vmatpush1.msra.mxu0 %v51
    %536 = vmatprep.subr.mxu0 %v50
    %537 = vmatpush1.msra.mxu0 %v49
    %538 = vmatprep.subr.mxu0 %v48
    %539 = vmatpush1.msra.mxu0 %v47
    %540 = vmatprep.subr.mxu0 %v46
    %541 = vmatpush1.msra.mxu0 %v45
    %542 = vmatprep.subr.mxu0 0.0
    %543 = vmatpush2.msra.mxu0 0.0
    %544 = vmatprep.subr.mxu0 0.0
    %545 = vmatpush2.msra.mxu0 0.0
    %546 = vmatprep.subr.mxu0 0.0
    %547 = vmatpush2.msra.mxu0 0.0
    %548 = vmatprep.subr.mxu0 0.0
    %549 = vmatpush2.msra.mxu0 0.0
    %550 = vmatprep.subr.mxu0 0.0
    %551 = vmatpush2.msra.mxu0 0.0
    %552 = vmatprep.subr.mxu0 0.0
    %553 = vmatpush2.msra.mxu0 0.0
    %554 = vmatprep.subr.mxu0 0.0
    %555 = vmatpush2.msra.mxu0 0.0
    %556 = vmatprep.subr.mxu0 0.0
    %557 = vmatpush2.msra.mxu0 0.0
    %558 = vmatprep.subr.mxu0 0.0
    %559 = vmatpush2.msra.mxu0 0.0
    %560 = vmatprep.subr.mxu0 0.0
    %561 = vmatpush2.msra.mxu0 0.0
    %562 = vmatprep.subr.mxu0 0.0
    %563 = vmatpush2.msra.mxu0 0.0
    %564 = vmatprep.subr.mxu0 0.0
    %565 = vmatpush2.msra.mxu0 0.0
    %566 = vmatprep.subr.mxu0 0.0
    %567 = vmatpush2.msra.mxu0 0.0
    %568 = vmatprep.subr.mxu0 0.0
    %569 = vmatpush2.msra.mxu0 0.0
    %570 = vmatprep.subr.mxu0 0.0
    %571 = vmatpush2.msra.mxu0 0.0
    %572 = vmatprep.subr.mxu0 0.0
    %573 = vmatpush2.msra.mxu0 0.0
    %574 = vmatprep.mubr.f32.mxu0 0.0
    %575 = vmatmul.mubr.f32.gmra.mxu0 %v506
    %v576 = vpop.f32.mrf.mxu0
    %v577 = vadd.f32 0.0, %v576
    %v578 = vpop.f32.mrf.mxu0
    %v579 = vadd.f32 0.0, %v578
    %580 = vdwg.mxu0
    %v581 = vadd.f32 %v508, %v577
    %v582 = vadd.f32 %v509, %v579
    %v583 = vxor.u32 %v581, 2147483648
    %v584 = vmul.f32 %v583, 1.442695
    %v585 = vpow.pop %v584
    %v586 = vadd.f32 %v585, 1.0
    %v587 = vrcp.pop %v586
    %v588 = vmul.f32 1.0, %v587
    %v589 = vmax.f32 %v582, 0.0
    %v590 = vsub.f32 %v589, %v506
    %v591 = vmul.f32 %v588, %v590
    %v592 = vadd.f32 %v506, %v591
    %s593 = scalar_lea.vmem [#allocation2], 96
    %v594 = vld [vmem:[%s593] sm:$0xff]
    %v595 = vld [vmem:[%s593 + $0x8] sm:$0xff]
    %596 = vmatprep.subr.mxu0 %v76
    %597 = vmatpush1.msra.mxu0 %v75
    %598 = vmatprep.subr.mxu0 %v74
    %599 = vmatpush1.msra.mxu0 %v73
    %600 = vmatprep.subr.mxu0 %v72
    %601 = vmatpush1.msra.mxu0 %v71
    %602 = vmatprep.subr.mxu0 %v70
    %603 = vmatpush1.msra.mxu0 %v69
    %604 = vmatprep.subr.mxu0 %v68
    %605 = vmatpush1.msra.mxu0 %v67
    %606 = vmatprep.subr.mxu0 %v66
    %607 = vmatpush1.msra.mxu0 %v65
    %608 = vmatprep.subr.mxu0 %v64
    %609 = vmatpush1.msra.mxu0 %v63
    %610 = vmatprep.subr.mxu0 %v62
    %611 = vmatpush1.msra.mxu0 %v61
    %612 = vmatprep.subr.mxu0 %v60
    %613 = vmatpush1.msra.mxu0 %v59
    %614 = vmatprep.subr.mxu0 %v58
    %615 = vmatpush1.msra.mxu0 %v57
    %616 = vmatprep.subr.mxu0 %v56
    %617 = vmatpush1.msra.mxu0 %v55
    %618 = vmatprep.subr.mxu0 %v54
    %619 = vmatpush1.msra.mxu0 %v53
    %620 = vmatprep.subr.mxu0 %v52
    %621 = vmatpush1.msra.mxu0 %v51
    %622 = vmatprep.subr.mxu0 %v50
    %623 = vmatpush1.msra.mxu0 %v49
    %624 = vmatprep.subr.mxu0 %v48
    %625 = vmatpush1.msra.mxu0 %v47
    %626 = vmatprep.subr.mxu0 %v46
    %627 = vmatpush1.msra.mxu0 %v45
    %628 = vmatprep.subr.mxu0 0.0
    %629 = vmatpush2.msra.mxu0 0.0
    %630 = vmatprep.subr.mxu0 0.0
    %631 = vmatpush2.msra.mxu0 0.0
    %632 = vmatprep.subr.mxu0 0.0
    %633 = vmatpush2.msra.mxu0 0.0
    %634 = vmatprep.subr.mxu0 0.0
    %635 = vmatpush2.msra.mxu0 0.0
    %636 = vmatprep.subr.mxu0 0.0
    %637 = vmatpush2.msra.mxu0 0.0
    %638 = vmatprep.subr.mxu0 0.0
    %639 = vmatpush2.msra.mxu0 0.0
    %640 = vmatprep.subr.mxu0 0.0
    %641 = vmatpush2.msra.mxu0 0.0
    %642 = vmatprep.subr.mxu0 0.0
    %643 = vmatpush2.msra.mxu0 0.0
    %644 = vmatprep.subr.mxu0 0.0
    %645 = vmatpush2.msra.mxu0 0.0
    %646 = vmatprep.subr.mxu0 0.0
    %647 = vmatpush2.msra.mxu0 0.0
    %648 = vmatprep.subr.mxu0 0.0
    %649 = vmatpush2.msra.mxu0 0.0
    %650 = vmatprep.subr.mxu0 0.0
    %651 = vmatpush2.msra.mxu0 0.0
    %652 = vmatprep.subr.mxu0 0.0
    %653 = vmatpush2.msra.mxu0 0.0
    %654 = vmatprep.subr.mxu0 0.0
    %655 = vmatpush2.msra.mxu0 0.0
    %656 = vmatprep.subr.mxu0 0.0
    %657 = vmatpush2.msra.mxu0 0.0
    %658 = vmatprep.subr.mxu0 0.0
    %659 = vmatpush2.msra.mxu0 0.0
    %660 = vmatprep.mubr.f32.mxu0 0.0
    %661 = vmatmul.mubr.f32.gmra.mxu0 %v592
    %v662 = vpop.f32.mrf.mxu0
    %v663 = vadd.f32 0.0, %v662
    %v664 = vpop.f32.mrf.mxu0
    %v665 = vadd.f32 0.0, %v664
    %666 = vdwg.mxu0
    %v667 = vadd.f32 %v594, %v663
    %v668 = vadd.f32 %v595, %v665
    %v669 = vxor.u32 %v667, 2147483648
    %v670 = vmul.f32 %v669, 1.442695
    %v671 = vpow.pop %v670
    %v672 = vadd.f32 %v671, 1.0
    %v673 = vrcp.pop %v672
    %v674 = vmul.f32 1.0, %v673
    %v675 = vmax.f32 %v668, 0.0
    %v676 = vsub.f32 %v675, %v592
    %v677 = vmul.f32 %v674, %v676
    %v678 = vadd.f32 %v592, %v677
    %s679 = scalar_lea.vmem [#allocation2], 112
    %v680 = vld [vmem:[%s679] sm:$0xff]
    %v681 = vld [vmem:[%s679 + $0x8] sm:$0xff]
    %682 = vmatprep.subr.mxu0 %v76
    %683 = vmatpush1.msra.mxu0 %v75
    %684 = vmatprep.subr.mxu0 %v74
    %685 = vmatpush1.msra.mxu0 %v73
    %686 = vmatprep.subr.mxu0 %v72
    %687 = vmatpush1.msra.mxu0 %v71
    %688 = vmatprep.subr.mxu0 %v70
    %689 = vmatpush1.msra.mxu0 %v69
    %690 = vmatprep.subr.mxu0 %v68
    %691 = vmatpush1.msra.mxu0 %v67
    %692 = vmatprep.subr.mxu0 %v66
    %693 = vmatpush1.msra.mxu0 %v65
    %694 = vmatprep.subr.mxu0 %v64
    %695 = vmatpush1.msra.mxu0 %v63
    %696 = vmatprep.subr.mxu0 %v62
    %697 = vmatpush1.msra.mxu0 %v61
    %698 = vmatprep.subr.mxu0 %v60
    %699 = vmatpush1.msra.mxu0 %v59
    %700 = vmatprep.subr.mxu0 %v58
    %701 = vmatpush1.msra.mxu0 %v57
    %702 = vmatprep.subr.mxu0 %v56
    %703 = vmatpush1.msra.mxu0 %v55
    %704 = vmatprep.subr.mxu0 %v54
    %705 = vmatpush1.msra.mxu0 %v53
    %706 = vmatprep.subr.mxu0 %v52
    %707 = vmatpush1.msra.mxu0 %v51
    %708 = vmatprep.subr.mxu0 %v50
    %709 = vmatpush1.msra.mxu0 %v49
    %710 = vmatprep.subr.mxu0 %v48
    %711 = vmatpush1.msra.mxu0 %v47
    %712 = vmatprep.subr.mxu0 %v46
    %713 = vmatpush1.msra.mxu0 %v45
    %714 = vmatprep.subr.mxu0 0.0
    %715 = vmatpush2.msra.mxu0 0.0
    %716 = vmatprep.subr.mxu0 0.0
    %717 = vmatpush2.msra.mxu0 0.0
    %718 = vmatprep.subr.mxu0 0.0
    %719 = vmatpush2.msra.mxu0 0.0
    %720 = vmatprep.subr.mxu0 0.0
    %721 = vmatpush2.msra.mxu0 0.0
    %722 = vmatprep.subr.mxu0 0.0
    %723 = vmatpush2.msra.mxu0 0.0
    %724 = vmatprep.subr.mxu0 0.0
    %725 = vmatpush2.msra.mxu0 0.0
    %726 = vmatprep.subr.mxu0 0.0
    %727 = vmatpush2.msra.mxu0 0.0
    %728 = vmatprep.subr.mxu0 0.0
    %729 = vmatpush2.msra.mxu0 0.0
    %730 = vmatprep.subr.mxu0 0.0
    %731 = vmatpush2.msra.mxu0 0.0
    %732 = vmatprep.subr.mxu0 0.0
    %733 = vmatpush2.msra.mxu0 0.0
    %734 = vmatprep.subr.mxu0 0.0
    %735 = vmatpush2.msra.mxu0 0.0
    %736 = vmatprep.subr.mxu0 0.0
    %737 = vmatpush2.msra.mxu0 0.0
    %738 = vmatprep.subr.mxu0 0.0
    %739 = vmatpush2.msra.mxu0 0.0
    %740 = vmatprep.subr.mxu0 0.0
    %741 = vmatpush2.msra.mxu0 0.0
    %742 = vmatprep.subr.mxu0 0.0
    %743 = vmatpush2.msra.mxu0 0.0
    %744 = vmatprep.subr.mxu0 0.0
    %745 = vmatpush2.msra.mxu0 0.0
    %746 = vmatprep.mubr.f32.mxu0 0.0
    %747 = vmatmul.mubr.f32.gmra.mxu0 %v678
    %v748 = vpop.f32.mrf.mxu0
    %v749 = vadd.f32 0.0, %v748
    %v750 = vpop.f32.mrf.mxu0
    %v751 = vadd.f32 0.0, %v750
    %752 = vdwg.mxu0
    %v753 = vadd.f32 %v680, %v749
    %v754 = vadd.f32 %v681, %v751
    %v755 = vxor.u32 %v753, 2147483648
    %v756 = vmul.f32 %v755, 1.442695
    %v757 = vpow.pop %v756
    %v758 = vadd.f32 %v757, 1.0
    %v759 = vrcp.pop %v758
    %v760 = vmul.f32 1.0, %v759
    %v761 = vmax.f32 %v754, 0.0
    %v762 = vsub.f32 %v761, %v678
    %v763 = vmul.f32 %v760, %v762
    %v764 = vadd.f32 %v678, %v763
    %765 = vst [vmem:[#allocation7] sm:$0xff] %v764
    // Predicated region
    $region22: #{tpu_custom_call.1} parent=1 // pred_check
      _
    $region23: #{tpu_custom_call.1} parent=1 // pred_check_branch
      %767 = sbr.rel (0) target = $region25
    $region24: #{tpu_custom_call.1} parent=1 // pred_region
      %s769 = ssub.s32 128, 128
      %770 = vsyncadd [#allocation4], %s769
      %s772 = sshll.u32 [#allocation7], 4
      %s773 = int_to_ptr.vmem [resolvable:$true] %s772
      %775 = dma.vmem_to_hbm [thread:$0]  %s773, 128, %s2, [#allocation4]
    $region25: #{tpu_custom_call.1} parent=1 // pred_fallthru
      _
    // Predicated region
    $region26: #{tpu_custom_call.1} parent=1 // pred_check
      _
    $region27: #{tpu_custom_call.1} parent=1 // pred_check_branch
      %777 = sbr.rel (0) target = $region29
    $region28: #{tpu_custom_call.1} parent=1 // pred_region
      %778 = dma.done [#allocation4], 128
    $region29: #{tpu_custom_call.1} parent=1 // pred_fallthru
      _
    %779 = vsyncpa [#allocation3], 1
    %780 = vsyncpa [#allocation6], 1
    %781 = vsyncpa [#allocation4], 1

</llo_original>
